<compile_context>
chip_gen: v6e
topology: v6e:2x2x1
jax: 0.10.0
libtpu: 0.0.40
codegen_flags: <defaults>
</compile_context>

<pallas_src>
import numpy as np
import jax
import jax.numpy as jnp
from jax.experimental import pallas as pl
from jax.experimental.pallas import tpu as pltpu


# ---------------------------------------------------------------------------
# Helpers
# ---------------------------------------------------------------------------
def _round_up(x: int, m: int) -> int:
    return ((x + m - 1) // m) * m


def _vmem_capacity_bytes() -> int:
    """Per-core VMEM capacity; conservative fallback (v7x = 64 MiB/core)."""
    try:
        return int(pltpu.get_tpu_info().vmem_capacity_bytes)
    except Exception:
        return 64 * 2**20


def _pick_batch_tile(rows: int) -> int:
    """Batch tile: multiple of 16 (bf16 sublane packing), 128-aligned for
    large batches (MXU M pass), targeting >= 4 grid steps so the software
    pipeline has real DMA overlap on every generation (and v7x's two
    TensorCores each get multiple steps)."""
    if rows <= 16:
        return 16
    if rows >= 4 * 128:
        return int(min(512, _round_up(pl.cdiv(rows, 4), 128)))
    return int(_round_up(pl.cdiv(rows, 4), 16))


def _tile_vmem_bytes(tb: int, tn: int, in_features: int,
                     c_item: int, o_item: int) -> int:
    """Conservative per-core VMEM estimate for one (tb, tn) tile choice."""
    return (2 * in_features * tn * c_item      # W tile (assume double-buffered)
            + 2 * tb * in_features * c_item    # x tile double buffer
            + 2 * tb * tn * o_item             # out tile double buffer
            + 2 * tn * 4)                      # (optional) bias tile


def _pick_n_tile(n_pad: int, in_features: int, tb: int,
                 c_item: int, o_item: int, budget: int) -> int:
    """Largest lane-dense divisor of n_pad whose tiles fit the VMEM budget."""
    m = n_pad // 128
    for k in range(1, m + 1):
        if m % k:
            continue
        tn = (m // k) * 128
        if _tile_vmem_bytes(tb, tn, in_features, c_item, o_item) <= budget:
            return tn
    return 128


# ---------------------------------------------------------------------------
# Pallas kernel: one (batch, N) tile of  out = x @ W  (+ bias), f32 MXU accum
# ---------------------------------------------------------------------------
def _make_kernel(has_bias: bool):
    if has_bias:
        def kernel(x_ref, w_ref, b_ref, o_ref):
            acc = jnp.dot(x_ref[...], w_ref[...],
                          preferred_element_type=jnp.float32)
            o_ref[...] = (acc + b_ref[...]).astype(o_ref.dtype)
    else:
        def kernel(x_ref, w_ref, o_ref):
            o_ref[...] = jnp.dot(x_ref[...], w_ref[...],
                                 preferred_element_type=jnp.float32
                                 ).astype(o_ref.dtype)
    return kernel


# ---------------------------------------------------------------------------
# Parameter preparation (run once at param-update time, NOT per forward)
# ---------------------------------------------------------------------------
def prepare_complex_dense(real_kernel, imag_kernel, *, scale=1.0, bias=None,
                          compute_dtype=jnp.bfloat16):
    """Builds W = [[R,-I],[I,R]]/scale, casts to compute dtype and pads the
    output lane dim to a multiple of 128.  Returns a dict reused by every
    forward call."""
    in_dim, out_features = real_kernel.shape
    n_out = 2 * out_features
    w = jnp.concatenate(
        [jnp.concatenate([real_kernel, -imag_kernel], axis=-1),
         jnp.concatenate([imag_kernel, real_kernel], axis=-1)], axis=0)
    w = (w * (1.0 / scale)).astype(compute_dtype)          # (2*in_dim, n_out)

    n_pad = _round_up(n_out, 128)
    if n_pad != n_out:
        w = jnp.pad(w, ((0, 0), (0, n_pad - n_out)))

    b = None
    if bias is not None:
        # TODO(synk): the PyTorch module declares bias with shape
        # (in_features, out_features), which cannot broadcast against the
        # (..., 2*out_features) output; we accept the intended per-output
        # bias of shape (2*out_features,) and fuse it into the epilogue.
        b = jnp.asarray(bias, jnp.float32).reshape(1, n_out)
        if n_pad != n_out:
            b = jnp.pad(b, ((0, 0), (0, n_pad - n_out)))

    return {"w": w, "bias": b, "n_out": n_out, "in_features": 2 * in_dim}


# ---------------------------------------------------------------------------
# Forward (mirrors Complex_Dense.forward)
# ---------------------------------------------------------------------------
def complex_dense_forward(inputs, prepared, *, out_dtype=None,
                          min_rows_for_pallas=32, interpret=False):
    """inputs: (..., 2*in_dim).  Returns (..., 2*out_features)."""
    w = prepared["w"]
    b = prepared["bias"]
    n_out = prepared["n_out"]
    in_features = prepared["in_features"]
    n_pad = w.shape[1]
    assert inputs.shape[-1] == in_features, "last dim must equal 2*in_dim"

    compute_dtype = w.dtype
    out_dtype = inputs.dtype if out_dtype is None else out_dtype
    lead_shape = inputs.shape[:-1]

    x2d = inputs.reshape(-1, in_features)
    rows = x2d.shape[0]

    # ---- tiny-batch fallback (same numerics: bf16 operands, f32 accum) ----
    if rows < min_rows_for_pallas:
        out = jnp.dot(x2d.astype(compute_dtype), w,
                      preferred_element_type=jnp.float32)
        if b is not None:
            out = out + b
        out = out[:, :n_out].astype(out_dtype)
        return out.reshape(*lead_shape, n_out)

    # ---- Pallas path ----
    x_c = x2d.astype(compute_dtype)
    c_item = jnp.dtype(compute_dtype).itemsize
    o_item = jnp.dtype(out_dtype).itemsize
    budget = int(0.8 * _vmem_capacity_bytes())

    tb = _pick_batch_tile(rows)
    tn = _pick_n_tile(n_pad, in_features, tb, c_item, o_item, budget)
    # If even a 128-lane N tile does not fit, shrink the batch tile too.
    while tb > 16 and _tile_vmem_bytes(tb, tn, in_features, c_item, o_item) > budget:
        tb = max(16, _round_up(tb // 2, 16))
        tn = _pick_n_tile(n_pad, in_features, tb, c_item, o_item, budget)

    rows_pad = _round_up(rows, tb)
    if rows_pad != rows:
        x_c = jnp.pad(x_c, ((0, rows_pad - rows), (0, 0)))

    need = _tile_vmem_bytes(tb, tn, in_features, c_item, o_item)
    vmem_limit = int(min(budget, max(32 * 2**20, 2 * need)))

    grid = (n_pad // tn, rows_pad // tb)          # N outer -> W resident per j
    has_bias = b is not None

    in_specs = [
        pl.BlockSpec((tb, in_features), lambda j, i: (i, 0)),   # x batch tile
        pl.BlockSpec((in_features, tn), lambda j, i: (0, j)),   # W lane tile
    ]
    operands = [x_c, w]
    if has_bias:
        in_specs.append(pl.BlockSpec((1, tn), lambda j, i: (0, j)))
        operands.append(b)

    out_pad = pl.pallas_call(
        _make_kernel(has_bias),
        out_shape=jax.ShapeDtypeStruct((rows_pad, n_pad), out_dtype),
        grid_spec=pltpu.PrefetchScalarGridSpec(
            num_scalar_prefetch=0,
            grid=grid,
            in_specs=in_specs,
            out_specs=pl.BlockSpec((tb, tn), lambda j, i: (i, j)),
        ),
        compiler_params=pltpu.CompilerParams(
            dimension_semantics=("arbitrary", "parallel"),
            vmem_limit_bytes=vmem_limit,
        ),
        interpret=interpret,
    )(*operands)

    # Slice only when padding was actually introduced (avoids an extra full
    # HBM pass over the output in the common, already-aligned case).
    out = out_pad
    if rows_pad != rows or n_pad != n_out:
        out = out[:rows, :n_out]
    return out.reshape(*lead_shape, n_out)


# ---------------------------------------------------------------------------
# Demo / correctness check
# ---------------------------------------------------------------------------
if __name__ == "__main__":
    # Shapes implied by the module: in_features = 2*in_dim, output = 2*out_features.
    in_features = 64           # -> in_dim = 32
    out_features = 64          # -> output width 128 (already lane-dense)
    scale = 2.0
    batch, seq = 2, 64         # 128 rows total -> Pallas path, 4 grid steps

    key = jax.random.PRNGKey(0)
    k_r, k_i, k_x = jax.random.split(key, 3)

    in_dim = in_features // 2
    # xavier_normal_ with gain = 1/sqrt(2): std = gain * sqrt(2 / (fan_in + fan_out))
    std = (1.0 / np.sqrt(2.0)) * np.sqrt(2.0 / (in_dim + out_features))
    real_kernel = std * jax.random.normal(k_r, (in_dim, out_features), jnp.float32)
    imag_kernel = std * jax.random.normal(k_i, (in_dim, out_features), jnp.float32)
    x = jax.random.normal(k_x, (batch, seq, in_features), jnp.float32)

    # Build W once (param-update time); reuse across forwards.
    prepared = prepare_complex_dense(real_kernel, imag_kernel, scale=scale)

    out = complex_dense_forward(x, prepared)
    out = jax.block_until_ready(out)
    assert out.shape == (batch, seq, 2 * out_features)

    # Reference: same math as the PyTorch forward, in f32.
    w_ref = jnp.concatenate(
        [jnp.concatenate([real_kernel, -imag_kernel], axis=-1),
         jnp.concatenate([imag_kernel, real_kernel], axis=-1)], axis=0) * (1.0 / scale)
    ref = jnp.einsum("bsi,io->bso", x, w_ref)

    # bf16 operands with f32 accumulation: compare at bf16-appropriate tolerance.
    np.testing.assert_allclose(np.asarray(out), np.asarray(ref), rtol=2e-2, atol=2e-2)

    print("KERNEL_OK")
</pallas_src>

<mosaic_0001>
module attributes {stable_mosaic.version = 11 : i64} {
  func.func @kernel(%arg0: i32, %arg1: i32, %arg2: memref<32x64xbf16, #tpu.memory_space<vmem>>, %arg3: memref<64x128xbf16, #tpu.memory_space<vmem>>, %arg4: memref<32x128xf32, #tpu.memory_space<vmem>>) attributes {dimension_semantics = [#tpu.dimension_semantics<arbitrary>, #tpu.dimension_semantics<parallel>], iteration_bounds = array<i64: 1, 4>, scalar_prefetch = 0 : i64, scratch_operands = 0 : i64, tpu.core_type = #tpu.core_type<tc>, window_params = [{transform_indices = @transform_0, window_bounds = array<i64: 32, 64>}, {transform_indices = @transform_1, window_bounds = array<i64: 64, 128>}, {transform_indices = @transform_2, window_bounds = array<i64: 32, 128>}]} {
    %c0 = arith.constant 0 : index
    %c0_0 = arith.constant 0 : index
    %0 = vector.load %arg2[%c0, %c0_0] : memref<32x64xbf16, #tpu.memory_space<vmem>>, vector<32x64xbf16>
    %c0_1 = arith.constant 0 : index
    %c0_2 = arith.constant 0 : index
    %1 = vector.load %arg3[%c0_1, %c0_2] : memref<64x128xbf16, #tpu.memory_space<vmem>>, vector<64x128xbf16>
    %cst = arith.constant dense<0.000000e+00> : vector<32x128xf32>
    %2 = tpu.matmul %0, %1, %cst {dimension_numbers = #tpu.dot_dimension_numbers<[1], [0], [0], [1], [0, 0, 1, 1], [], []>} : vector<32x64xbf16>, vector<64x128xbf16>, vector<32x128xf32> -> vector<32x128xf32>
    %c0_3 = arith.constant 0 : index
    %c0_4 = arith.constant 0 : index
    %3 = vector.load %arg4[%c0_3, %c0_4] : memref<32x128xf32, #tpu.memory_space<vmem>>, vector<32x128xf32>
    tpu.vector_store %arg4[%c0_3, %c0_4], %2 {strides = array<i32>} : memref<32x128xf32, #tpu.memory_space<vmem>>, vector<32x128xf32>,
    return
  }
  func.func @transform_0(%arg0: i32, %arg1: i32) -> (i32, i32) {
    %c0_i32 = arith.constant 0 : i32
    %c0_i32_0 = arith.constant 0 : i32
    return %arg1, %c0_i32 : i32, i32
  }
  func.func @transform_1(%arg0: i32, %arg1: i32) -> (i32, i32) {
    %c0_i32 = arith.constant 0 : i32
    %c0_i32_0 = arith.constant 0 : i32
    return %c0_i32, %arg0 : i32, i32
  }
  func.func @transform_2(%arg0: i32, %arg1: i32) -> (i32, i32) {
    %c0_i32 = arith.constant 0 : i32
    return %arg1, %arg0 : i32, i32
  }
}

</mosaic_0001>

<llo_original>
// kernel: tpu_custom_call.1
$region0: #{tpu_custom_call.1}
  #allocation0 [shape = 'u32[]', space=smem, size = 0x4, offset = 0x4, fixed_abs, tag = 'smem constant byte address 0x4 - core index']
  #allocation1 [shape = 'u32[144,128]{1,0:T(1,128)}', space=vmem, size = 0x12000, scoped, tag = 'internal scratch']
  %s0 = inlined_call_operand.vmem [shape: bf16[128,64], index: 0, kind: input, shape index: {}]
  %s1 = inlined_call_operand.vmem [shape: bf16[64,128], index: 1, kind: input, shape index: {}]
  %s2 = inlined_call_operand.hbm [shape: f32[128,128], index: 2, kind: output, shape index: {}]
  %s3 = sld [smem:[#allocation0]]
  $region41: #{tpu_custom_call.1} parent=0
    _
  %s5 = ssub.s32 1, %s3
  %s6 = scalar_select 0, %s5, %s3
  $region1: #{tpu_custom_call.1} parent=0
    #allocation2 [shape = 'u8[32768]{0}', space=vmem, size = 0x8000, scoped, tag = 'output window, operand 0']
    #allocation3 [shape = 's32[2]{0}', space=sflag, size = 0x8, scoped, tag = 'scoped memory for tpu_custom_call.1']
    %7 = vsyncpa [#allocation3], 0
    %s8 = scalar_lea.sflag [#allocation3], 1
    %9 = vsyncpa %s8, 0
    loop: start=0, step=1, limit=6
    $region2: #{tpu_custom_call.1} parent=1 // loop_pre_header
      _
    $region3: #{tpu_custom_call.1} parent=1 // loop_header
      %s11 = sphi 0, %s15
      %p12 = scmp.ge.s32.totalorder %s11, 6
      %s18 = sphi 0, %s30
      %s19 = sphi 0, %s26
      %s20 = sphi 0, %s18
      %s21 = sphi 0, %s19
      %s22 = sphi 0, %s20
      %s23 = sphi 0, %s21
      %s33 = sphi 0, %s35
      %s36 = sphi 0, %s33
      %s37 = sphi 0, %s36
      %s53 = sphi 0, %s37
      %s59 = sphi 0, %s61
      %s62 = sphi 0, %s59
      %s63 = sphi 0, %s62
      %s79 = sphi 0, %s63
      %s87 = sphi 0, %s89
      %s90 = sphi 0, %s87
      %s91 = sphi 0, %s90
      %s107 = sphi 0, %s91
    $region4: #{tpu_custom_call.1} parent=1 // loop_header_branch
      %14 = sbr.rel (%p12) target = $region8
    $region5: #{tpu_custom_call.1} parent=1 // loop_body
      %s16 = ssub.s32 %s11, 1
      %s17 = ssub.s32 %s11, 2
      %s24 = sadd.s32 1, %s19
      %p25 = scmp.ge.s32.totalorder %s24, 4
      %s26 = scalar_select %p25, 0, %s24
      %s27 = sadd.s32 1, %s18
      %s28 = scalar_select %p25, %s27, %s18
      %p29 = scmp.ge.s32.totalorder %s28, 1
      %s30 = scalar_select %p29, 0, %s28
      %s31 = ssub.s32 %s19, %s26
      %p32 = scmp.eq.s32.totalorder %s31, 0
      %s34 = sadd.s32 %s33, 1
      %s35 = scalar_select %p32, %s33, %s34
      %p38 = pneg %p32
      %p39 = scmp.eq.s32.totalorder %s11, 3
      %p40 = por %p38, %p39
      %p41 = scmp.ne.s32.totalorder %s33, %s36
      %p42 = scmp.eq.s32.totalorder %s11, 0
      %p43 = por %p41, %p42
      %p44 = scmp.ne.s32.totalorder %s33, %s36
      %p45 = scmp.eq.s32.totalorder %s16, 3
      %p46 = por %p44, %p45
      %p47 = scmp.ne.s32.totalorder %s36, %s37
      %p48 = scmp.eq.s32.totalorder %s16, 0
      %p49 = por %p47, %p48
      %p50 = scmp.ne.s32.totalorder %s36, %s37
      %p51 = scmp.eq.s32.totalorder %s17, 3
      %p52 = por %p50, %p51
      %p54 = scmp.ne.s32.totalorder %s37, %s53
      %p55 = scmp.eq.s32.totalorder %s17, 0
      %p56 = por %p54, %p55
      %s57 = ssub.s32 %s18, %s30
      %p58 = scmp.eq.s32.totalorder %s57, 0
      %s60 = sadd.s32 %s59, 1
      %s61 = scalar_select %p58, %s59, %s60
      %p64 = pneg %p58
      %p65 = scmp.eq.s32.totalorder %s11, 3
      %p66 = por %p64, %p65
      %p67 = scmp.ne.s32.totalorder %s59, %s62
      %p68 = scmp.eq.s32.totalorder %s11, 0
      %p69 = por %p67, %p68
      %p70 = scmp.ne.s32.totalorder %s59, %s62
      %p71 = scmp.eq.s32.totalorder %s16, 3
      %p72 = por %p70, %p71
      %p73 = scmp.ne.s32.totalorder %s62, %s63
      %p74 = scmp.eq.s32.totalorder %s16, 0
      %p75 = por %p73, %p74
      %p76 = scmp.ne.s32.totalorder %s62, %s63
      %p77 = scmp.eq.s32.totalorder %s17, 3
      %p78 = por %p76, %p77
      %p80 = scmp.ne.s32.totalorder %s63, %s79
      %p81 = scmp.eq.s32.totalorder %s17, 0
      %p82 = por %p80, %p81
      %s83 = ssub.s32 %s19, %s26
      %s84 = ssub.s32 %s18, %s30
      %s85 = sor.u32 %s83, %s84
      %p86 = scmp.eq.s32.totalorder %s85, 0
      %s88 = sadd.s32 %s87, 1
      %s89 = scalar_select %p86, %s87, %s88
      %p92 = pneg %p86
      %p93 = scmp.eq.s32.totalorder %s11, 3
      %p94 = por %p92, %p93
      %p95 = scmp.ne.s32.totalorder %s87, %s90
      %p96 = scmp.eq.s32.totalorder %s11, 0
      %p97 = por %p95, %p96
      %p98 = scmp.ne.s32.totalorder %s87, %s90
      %p99 = scmp.eq.s32.totalorder %s16, 3
      %p100 = por %p98, %p99
      %p101 = scmp.ne.s32.totalorder %s90, %s91
      %p102 = scmp.eq.s32.totalorder %s16, 0
      %p103 = por %p101, %p102
      %p104 = scmp.ne.s32.totalorder %s90, %s91
      %p105 = scmp.eq.s32.totalorder %s17, 3
      %p106 = por %p104, %p105
      %p108 = scmp.ne.s32.totalorder %s91, %s107
      %p109 = scmp.eq.s32.totalorder %s17, 0
      %p110 = por %p108, %p109
      %p111 = scmp.le.s32.totalorder 1, %s11
      %p112 = scmp.lt.s32.totalorder %s11, 5
      %p113 = pnand %p111, %p112
      %p114 = pneg %p113
      // Predicated region
      $region9: #{tpu_custom_call.1} parent=5 // pred_check
        _
      $region10: #{tpu_custom_call.1} parent=5 // pred_check_branch
        %116 = sbr.rel (%p113) target = $region12
      $region11: #{tpu_custom_call.1} parent=5 // pred_region
        %s117 = ssub.s32 %s11, 1
        // Predicated region
        $region13: #{tpu_custom_call.1} parent=11 // pred_check
          %p118 = pneg %p75
        $region14: #{tpu_custom_call.1} parent=11 // pred_check_branch
          %120 = sbr.rel (%p118) target = $region16
        $region15: #{tpu_custom_call.1} parent=11 // pred_region
          %p121 = scmp.lt.s32.totalorder %s20, 0
          %s122 = scalar_select %p121, %s20, 0
          %s123 = smul.addr %s122, 4
          %s124 = scalar_lea.vmem %s1, %s123
        $region16: #{tpu_custom_call.1} parent=11 // pred_fallthru
          _
      $region12: #{tpu_custom_call.1} parent=5 // pred_fallthru
        _
      %p125 = scmp.lt.s32.totalorder %s11, 4
      // Predicated region
      $region17: #{tpu_custom_call.1} parent=5 // pred_check
        %p126 = pneg %p125
      $region18: #{tpu_custom_call.1} parent=5 // pred_check_branch
        %128 = sbr.rel (%p126) target = $region20
      $region19: #{tpu_custom_call.1} parent=5 // pred_region
        // Predicated region
        $region21: #{tpu_custom_call.1} parent=19 // pred_check
          %p129 = pneg %p43
        $region22: #{tpu_custom_call.1} parent=19 // pred_check_branch
          %131 = sbr.rel (%p129) target = $region24
        $region23: #{tpu_custom_call.1} parent=19 // pred_region
          %s132 = smul.u32 4, %s19
          %p133 = scmp.lt.s32.totalorder %s132, 15
          %s134 = scalar_select %p133, %s132, 15
          %s135 = smul.addr %s134, 4
          %s136 = scalar_lea.vmem %s0, %s135
          %s137 = smul.u32 4, %s19
        $region24: #{tpu_custom_call.1} parent=19 // pred_fallthru
          _
      $region20: #{tpu_custom_call.1} parent=5 // pred_fallthru
        _
      %p138 = scmp.le.s32.totalorder 1, %s11
      %p139 = scmp.lt.s32.totalorder %s11, 5
      %p140 = pnand %p138, %p139
      %p141 = pneg %p140
      // Predicated region
      $region25: #{tpu_custom_call.1} parent=5 // pred_check
        _
      $region26: #{tpu_custom_call.1} parent=5 // pred_check_branch
        %143 = sbr.rel (%p140) target = $region28
      $region27: #{tpu_custom_call.1} parent=5 // pred_region
        %s144 = ssub.s32 %s11, 1
        %s145 = smul.u32 4, %s21
        %p146 = scmp.lt.s32.totalorder %s145, 15
        %s147 = scalar_select %p146, %s145, 15
        %s148 = smul.addr %s147, 4
        %s149 = scalar_lea.vmem %s0, %s148
        %p150 = pneg %p49
        %p151 = pneg %p46
        %p152 = scmp.lt.s32.totalorder %s20, 0
        %s153 = scalar_select %p152, %s20, 0
        %s154 = smul.addr %s153, 4
        %s155 = scalar_lea.vmem %s1, %s154
        %p156 = pneg %p75
        %p157 = pneg %p72
        %p158 = pneg %p103
        %p159 = pneg %p100
        %s160 = sand.u32 %s90, 1
        %s161 = scalar_lea.sflag [#allocation3], %s160
        %s162 = sand.u32 %s90, 1
        %s163 = smul.addr %s162, 32
        %s164 = scalar_lea.vmem [#allocation2], %s163
        %s165 = smul.u32 4, %s21
        %p166 = scmp.lt.s32.totalorder %s165, 15
        %s167 = scalar_select %p166, %s165, 15
        %s168 = smul.addr %s167, 4
        %s169 = scalar_lea.vmem %s0, %s168
        %s170 = smul.u32 4, %s21
        %p171 = scmp.lt.s32.totalorder %s20, 0
        %s172 = scalar_select %p171, %s20, 0
        %s173 = smul.addr %s172, 4
        %s174 = scalar_lea.vmem %s1, %s173
        %s175 = smul.u32 4, %s21
        %v177 = vld [vmem:[%s169] sm:$0xf]
        %v178 = vld [vmem:[%s169 + $0x4] sm:$0xf]
        %v179 = vld [vmem:[%s169 + $0x8] sm:$0xf]
        %v180 = vld [vmem:[%s169 + $0xc] sm:$0xf]
        %v181 = vld [vmem:[%s174] sm:$0xf]
        %v182 = vld [vmem:[%s174 + $0x4] sm:$0xf]
        %v183 = vld [vmem:[%s174 + $0x8] sm:$0xf]
        %v184 = vld [vmem:[%s174 + $0xc] sm:$0xf]
        %v185 = vld [vmem:[%s174 + $0x10] sm:$0xf]
        %v186 = vld [vmem:[%s174 + $0x14] sm:$0xf]
        %v187 = vld [vmem:[%s174 + $0x18] sm:$0xf]
        %v188 = vld [vmem:[%s174 + $0x1c] sm:$0xf]
        %v193 = vunpack.c.l.b16 %v177
        %v194 = vunpack.c.l.b16 %v178
        %v195 = vunpack.c.l.b16 %v179
        %v196 = vunpack.c.l.b16 %v180
        %v197 = vpack.c.b16 %v194, %v193
        %v198 = vpack.c.b16 %v196, %v195
        %v207 = vunpack.c.l.b16 %v181
        %v208 = vunpack.c.l.b16 %v182
        %v209 = vunpack.c.l.b16 %v183
        %v210 = vunpack.c.l.b16 %v184
        %v211 = vunpack.c.l.b16 %v185
        %v212 = vunpack.c.l.b16 %v186
        %v213 = vunpack.c.l.b16 %v187
        %v214 = vunpack.c.l.b16 %v188
        %v215 = vpack.c.b16 %v208, %v207
        %v216 = vpack.c.b16 %v210, %v209
        %v217 = vpack.c.b16 %v212, %v211
        %v218 = vpack.c.b16 %v214, %v213
        %vm223 = vcmask 523264
        %v225 = vsel %vm223, %v197, 0
        %v228 = vsel %vm223, %v198, 0
        %230 = vmatprep.subr.bf16.mxu0 0
        %231 = vmatpush1.bf16.msra.mxu0 0
        %232 = vmatprep.subr.bf16.mxu0 0
        %233 = vmatpush1.bf16.msra.mxu0 0
        %234 = vmatprep.subr.bf16.mxu0 0
        %235 = vmatpush1.bf16.msra.mxu0 0
        %236 = vmatprep.subr.bf16.mxu0 0
        %237 = vmatpush1.bf16.msra.mxu0 0
        %238 = vmatprep.subr.bf16.mxu0 0
        %239 = vmatpush1.bf16.msra.mxu0 %v218
        %240 = vmatprep.subr.bf16.mxu0 0
        %241 = vmatpush1.bf16.msra.mxu0 %v217
        %242 = vmatprep.subr.bf16.mxu0 0
        %243 = vmatpush1.bf16.msra.mxu0 %v216
        %244 = vmatprep.subr.bf16.mxu0 0
        %245 = vmatpush1.bf16.msra.mxu0 %v215
        %246 = vmatprep.subr.bf16.mxu0 0
        %247 = vmatpush2.bf16.msra.mxu0 0
        %248 = vmatprep.subr.bf16.mxu0 0
        %249 = vmatpush2.bf16.msra.mxu0 0
        %250 = vmatprep.subr.bf16.mxu0 0
        %251 = vmatpush2.bf16.msra.mxu0 0
        %252 = vmatprep.subr.bf16.mxu0 0
        %253 = vmatpush2.bf16.msra.mxu0 0
        %254 = vmatprep.subr.bf16.mxu0 0
        %255 = vmatpush2.bf16.msra.mxu0 0
        %256 = vmatprep.subr.bf16.mxu0 0
        %257 = vmatpush2.bf16.msra.mxu0 0
        %258 = vmatprep.subr.bf16.mxu0 0
        %259 = vmatpush2.bf16.msra.mxu0 0
        %260 = vmatprep.subr.bf16.mxu0 0
        %261 = vmatpush2.bf16.msra.mxu0 0
        %262 = vmatprep.mubr.bf16.mxu0 0
        %263 = vmatmul.mubr.bf16.gmra.mxu0 %v225
        %v264 = vpop.f32.mrf.mxu0
        %v265 = vadd.f32 0.0, %v264
        %v266 = vpop.f32.mrf.mxu0
        %v267 = vpop.f32.mrf.mxu0
        %v268 = vadd.f32 0.0, %v267
        %v269 = vpop.f32.mrf.mxu0
        %270 = vmatprep.mubr.bf16.mxu0 0
        %271 = vmatmul.mubr.bf16.gmra.mxu0 %v228
        %v272 = vpop.f32.mrf.mxu0
        %v273 = vadd.f32 0.0, %v272
        %v274 = vpop.f32.mrf.mxu0
        %v275 = vpop.f32.mrf.mxu0
        %v276 = vadd.f32 0.0, %v275
        %v277 = vpop.f32.mrf.mxu0
        %278 = vdwg.mxu0
        %279 = vst [vmem:[%s164] sm:$0xff] %v265
        %280 = vst [vmem:[%s164 + $0x8] sm:$0xff] %v268
        %281 = vst [vmem:[%s164 + $0x10] sm:$0xff] %v273
        %282 = vst [vmem:[%s164 + $0x18] sm:$0xff] %v276
        %s283 = sand.u32 %s90, 1
        %s284 = scalar_lea.sflag [#allocation3], %s283
        %s285 = sand.u32 %s90, 1
        %s286 = smul.addr %s285, 32
        %s287 = scalar_lea.vmem [#allocation2], %s286
        // Predicated region
        $region29: #{tpu_custom_call.1} parent=27 // pred_check
          %p288 = pneg %p100
        $region30: #{tpu_custom_call.1} parent=27 // pred_check_branch
          %290 = sbr.rel (%p288) target = $region32
        $region31: #{tpu_custom_call.1} parent=27 // pred_region
          %s291 = smul.u32 4, %s21
          %s293 = ssub.s32 512, 512
          %294 = vsyncadd %s284, %s293
          %s295 = sadd.s32 %s20, %s291
          %s296 = smul.addr %s295, 128
          %s297 = scalar_lea.hbm %s2, %s296
          %s298 = sshll.u32 %s287, 4
          %s299 = int_to_ptr.vmem [resolvable:$true] %s298
          %304 = dma.vmem_to_hbm [thread:$0]  %s299, 512, %s297, %s284, 128, 128, 8
        $region32: #{tpu_custom_call.1} parent=27 // pred_fallthru
          _
      $region28: #{tpu_custom_call.1} parent=5 // pred_fallthru
        _
      %p305 = scmp.le.s32.totalorder 2, %s11
      // Predicated region
      $region33: #{tpu_custom_call.1} parent=5 // pred_check
        %p306 = pneg %p305
      $region34: #{tpu_custom_call.1} parent=5 // pred_check_branch
        %308 = sbr.rel (%p306) target = $region36
      $region35: #{tpu_custom_call.1} parent=5 // pred_region
        %s309 = ssub.s32 %s11, 2
        // Predicated region
        $region37: #{tpu_custom_call.1} parent=35 // pred_check
          %p310 = pneg %p106
        $region38: #{tpu_custom_call.1} parent=35 // pred_check_branch
          %312 = sbr.rel (%p310) target = $region40
        $region39: #{tpu_custom_call.1} parent=35 // pred_region
          %s313 = sand.u32 %s91, 1
          %s314 = scalar_lea.sflag [#allocation3], %s313
          %s315 = sand.u32 %s91, 1
          %s316 = smul.addr %s315, 32
          %s317 = scalar_lea.vmem [#allocation2], %s316
          %318 = dma.done %s314, 512
        $region40: #{tpu_custom_call.1} parent=35 // pred_fallthru
          _
      $region36: #{tpu_custom_call.1} parent=5 // pred_fallthru
        _
    $region6: #{tpu_custom_call.1} parent=1 // loop_footer
      %s15 = sadd.s32 1, %s11
    $region7: #{tpu_custom_call.1} parent=1 // loop_footer_branch
      %10 = sbr.rel target = $region3
    $region8: #{tpu_custom_call.1} parent=1 // loop_exit
      _
    %319 = vsyncpa [#allocation3], 1
    %s320 = scalar_lea.sflag [#allocation3], 1
    %321 = vsyncpa %s320, 1

</llo_original>
